<compile_context>
chip_gen: v7x
topology: tpu7x:2x2x1
jax: 0.10.0
libtpu: 0.0.40
codegen_flags: <defaults>
</compile_context>

<pallas_src>
import functools

import jax
import jax.numpy as jnp
from jax.experimental import pallas as pl
from jax.experimental.pallas import tpu as pltpu


# ---------------------------------------------------------------------------
# Kernel
# ---------------------------------------------------------------------------
def _mlp_kernel(x_ref, w1_ref, b1_ref, w2_ref, b2_ref, w3_ref, b3_ref, o_ref):
    # bf16 operands -> MXU bf16 peak; f32 accumulation; bias/ReLU in f32.
    x = x_ref[...].astype(jnp.bfloat16)
    h1 = jnp.dot(x, w1_ref[...], preferred_element_type=jnp.float32) + b1_ref[...]
    h1 = jnp.maximum(h1, 0.0).astype(jnp.bfloat16)
    h2 = jnp.dot(h1, w2_ref[...], preferred_element_type=jnp.float32) + b2_ref[...]
    h2 = jnp.maximum(h2, 0.0).astype(jnp.bfloat16)
    y = jnp.dot(h2, w3_ref[...], preferred_element_type=jnp.float32) + b3_ref[...]
    o_ref[...] = y.astype(o_ref.dtype)


# ---------------------------------------------------------------------------
# Hardware-aware tiling policy
# ---------------------------------------------------------------------------
def _round_up8(n):
    return -(-n // 8) * 8


def _tensorcores_per_chip():
    """2 TCs on v7x (and megacore v4/v5p); 1 on v5e/v6e.  Safe fallback: 1."""
    try:
        kind = jax.devices()[0].device_kind.lower()
    except Exception:
        return 1
    return 2 if any(t in kind for t in ("v7", "v4", "v5p")) else 1


def _vmem_capacity_bytes():
    try:
        return int(pltpu.get_tpu_info().vmem_capacity_bytes)
    except Exception:
        return 64 * 1024 * 1024  # conservative: v7x per-TC VMEM


def _pick_block_b(batch, in_dim, out_dim, num_cores, act_budget_bytes):
    """Batch tile: multiple of 8; one big step on single-TC chips; step count a
    multiple of num_cores on multi-TC chips; clamped to the VMEM budget."""

    def act_bytes(bb):
        # double-buffered f32 x tile + double-buffered f32 out tile
        return 2 * bb * (in_dim + out_dim) * 4

    # Fewest steps the core count allows (1 step on v5e/v6e, 2 on v7x).
    bb = _round_up8(pl.cdiv(batch, num_cores))
    bb = min(bb, _round_up8(batch))
    # Shrink until the activation tiles fit the scoped-VMEM budget.
    while bb > 8 and act_bytes(bb) > act_budget_bytes:
        bb = _round_up8(pl.cdiv(bb, 2))
    # Keep the step count a multiple of the core count so no TC sits half-idle.
    if num_cores > 1:
        steps = pl.cdiv(batch, bb)
        steps = ((steps + num_cores - 1) // num_cores) * num_cores
        bb = min(bb, _round_up8(pl.cdiv(batch, steps)))
    return max(8, bb)


# ---------------------------------------------------------------------------
# Wrapper
# ---------------------------------------------------------------------------
@functools.partial(jax.jit, static_argnames=("core_parallel",))
def stage2_mlp(x, w1, b1, w2, b2, w3, b3, *, core_parallel=False):
    """x: [B, in_dim] f32.  w_i: (in, out) bf16 (preferred) or f32.
    b_i: (1, out) f32.  Returns f32 [B, out_dim]."""
    batch, in_dim = x.shape
    hid = w1.shape[1]
    out_dim = w3.shape[1]

    # Prefer pre-cast bf16 params (init_params provides them); this fallback
    # cast costs a full extra weight pass over HBM per call -- avoid it.
    if w1.dtype != jnp.bfloat16:
        w1, w2, w3 = (w.astype(jnp.bfloat16) for w in (w1, w2, w3))
    b1, b2, b3 = (b.astype(jnp.float32) for b in (b1, b2, b3))

    # --- VMEM accounting (bytes) -------------------------------------------
    # Pallas double-buffers every input, including grid-invariant ones.
    weight_vmem = 2 * (
        (in_dim * hid + hid * hid + hid * out_dim) * 2      # bf16 weights
        + (hid + hid + out_dim) * 4                          # f32 biases
    )
    capacity = _vmem_capacity_bytes()
    act_budget = max(capacity // 2 - weight_vmem, 1 << 20)

    num_cores = _tensorcores_per_chip()
    bb = _pick_block_b(batch, in_dim, out_dim, num_cores, act_budget)
    grid = (pl.cdiv(batch, bb),)

    act_vmem = 2 * bb * (in_dim + out_dim) * 4
    vmem_limit = int(min(capacity, max(32 << 20, weight_vmem + act_vmem + (8 << 20))))

    # --- cost hint for the XLA scheduler ------------------------------------
    flops = 2 * batch * (in_dim * hid + hid * hid + hid * out_dim)
    bytes_accessed = (
        batch * in_dim * 4                                   # x (f32)
        + batch * out_dim * 4                                # out (f32)
        + (in_dim * hid + hid * hid + hid * out_dim) * 2     # bf16 weights
        + (hid + hid + out_dim) * 4                          # f32 biases
    )

    dim_sem = (pltpu.CORE_PARALLEL,) if core_parallel else ("parallel",)

    return pl.pallas_call(
        _mlp_kernel,
        out_shape=jax.ShapeDtypeStruct((batch, out_dim), jnp.float32),
        grid_spec=pltpu.PrefetchScalarGridSpec(
            num_scalar_prefetch=0,
            grid=grid,
            in_specs=[
                # batch tile of activations
                pl.BlockSpec((bb, in_dim), lambda i: (i, 0)),
                # full weights / biases, resident across all batch tiles
                pl.BlockSpec((in_dim, hid), lambda i: (0, 0)),
                pl.BlockSpec((1, hid), lambda i: (0, 0)),
                pl.BlockSpec((hid, hid), lambda i: (0, 0)),
                pl.BlockSpec((1, hid), lambda i: (0, 0)),
                pl.BlockSpec((hid, out_dim), lambda i: (0, 0)),
                pl.BlockSpec((1, out_dim), lambda i: (0, 0)),
            ],
            out_specs=pl.BlockSpec((bb, out_dim), lambda i: (i, 0)),
        ),
        compiler_params=pltpu.CompilerParams(
            dimension_semantics=dim_sem,
            vmem_limit_bytes=vmem_limit,
        ),
        cost_estimate=pl.CostEstimate(
            flops=flops, transcendentals=0, bytes_accessed=bytes_accessed
        ),
    )(x, w1, b1, w2, b2, w3, b3)


# ---------------------------------------------------------------------------
# Params (weights stored as bf16 ONCE here -> no per-call cast)
# ---------------------------------------------------------------------------
def init_params(key, input_dim, output_dim, hidden=256):
    """Deterministic synthetic init mimicking nn.Linear shapes.

    PyTorch Linear weight is (out, in); we store the transpose (in, out).
    Weights are returned in bf16 (MXU-native, half the HBM traffic); biases f32."""
    ks = jax.random.split(key, 6)

    def linear(kw, kb, fan_in, fan_out):
        bound = 1.0 / jnp.sqrt(fan_in)
        w = jax.random.uniform(kw, (fan_in, fan_out), jnp.float32, -bound, bound)
        b = jax.random.uniform(kb, (1, fan_out), jnp.float32, -bound, bound)
        return w.astype(jnp.bfloat16), b

    w1, b1 = linear(ks[0], ks[1], input_dim, hidden)
    w2, b2 = linear(ks[2], ks[3], hidden, hidden)
    w3, b3 = linear(ks[4], ks[5], hidden, output_dim)
    return w1, b1, w2, b2, w3, b3


if __name__ == "__main__":
    key = jax.random.PRNGKey(0)
    k_x, k_p = jax.random.split(key)

    batch, input_dim, output_dim = 128, 32, 16
    x = jax.random.normal(k_x, (batch, input_dim), jnp.float32)
    params = init_params(k_p, input_dim, output_dim)

    out = jax.block_until_ready(stage2_mlp(x, *params))

    # Pure-JAX reference with the same bf16-operand / f32-accumulate recipe.
    w1, b1, w2, b2, w3, b3 = params
    xb = x.astype(jnp.bfloat16)
    h1 = jnp.maximum(jnp.dot(xb, w1, preferred_element_type=jnp.float32) + b1, 0.0)
    h2 = jnp.maximum(
        jnp.dot(h1.astype(jnp.bfloat16), w2, preferred_element_type=jnp.float32) + b2, 0.0
    )
    ref = jnp.dot(h2.astype(jnp.bfloat16), w3, preferred_element_type=jnp.float32) + b3

    assert out.shape == (batch, output_dim)
    assert jnp.allclose(out, ref, atol=1e-3, rtol=1e-3), "mismatch vs bf16 reference"

    # Numerics-contract sanity check vs. the original f32 PyTorch semantics:
    # bf16 weights/activations introduce O(1e-2) absolute drift at these scales.
    w1f, w2f, w3f = (w.astype(jnp.float32) for w in (w1, w2, w3))
    h1f = jnp.maximum(x @ w1f + b1, 0.0)
    h2f = jnp.maximum(h1f @ w2f + b2, 0.0)
    ref_f32 = h2f @ w3f + b3
    drift = float(jnp.max(jnp.abs(out - ref_f32)))
    assert drift < 0.5, f"unexpectedly large bf16 drift vs f32 reference: {drift}"

    print("KERNEL_OK")
</pallas_src>

<mosaic_0001>
module attributes {stable_mosaic.version = 11 : i64} {
  func.func @_mlp_kernel(%arg0: i32, %arg1: memref<128x32xf32, #tpu.memory_space<vmem>>, %arg2: memref<32x256xbf16, #tpu.memory_space<vmem>>, %arg3: memref<1x256xf32, #tpu.memory_space<vmem>>, %arg4: memref<256x256xbf16, #tpu.memory_space<vmem>>, %arg5: memref<1x256xf32, #tpu.memory_space<vmem>>, %arg6: memref<256x16xbf16, #tpu.memory_space<vmem>>, %arg7: memref<1x16xf32, #tpu.memory_space<vmem>>, %arg8: memref<128x16xf32, #tpu.memory_space<vmem>>) attributes {dimension_semantics = [#tpu.dimension_semantics<parallel>], iteration_bounds = array<i64: 1>, scalar_prefetch = 0 : i64, scratch_operands = 0 : i64, tpu.core_type = #tpu.core_type<tc>, window_params = [{transform_indices = @transform_0, window_bounds = array<i64: 128, 32>}, {pipeline_mode = #tpu.pipeline_mode<synchronous>, transform_indices = @transform_1, window_bounds = array<i64: 32, 256>}, {pipeline_mode = #tpu.pipeline_mode<synchronous>, transform_indices = @transform_2, window_bounds = array<i64: 1, 256>}, {pipeline_mode = #tpu.pipeline_mode<synchronous>, transform_indices = @transform_3, window_bounds = array<i64: 256, 256>}, {pipeline_mode = #tpu.pipeline_mode<synchronous>, transform_indices = @transform_4, window_bounds = array<i64: 1, 256>}, {pipeline_mode = #tpu.pipeline_mode<synchronous>, transform_indices = @transform_5, window_bounds = array<i64: 256, 16>}, {pipeline_mode = #tpu.pipeline_mode<synchronous>, transform_indices = @transform_6, window_bounds = array<i64: 1, 16>}, {transform_indices = @transform_7, window_bounds = array<i64: 128, 16>}]} {
    %c0 = arith.constant 0 : index
    %c0_0 = arith.constant 0 : index
    %0 = vector.load %arg1[%c0, %c0_0] : memref<128x32xf32, #tpu.memory_space<vmem>>, vector<128x32xf32>
    %1 = arith.truncf %0 : vector<128x32xf32> to vector<128x32xbf16>
    %c0_1 = arith.constant 0 : index
    %c0_2 = arith.constant 0 : index
    %2 = vector.load %arg2[%c0_1, %c0_2] : memref<32x256xbf16, #tpu.memory_space<vmem>>, vector<32x256xbf16>
    %cst = arith.constant dense<0.000000e+00> : vector<128x256xf32>
    %3 = tpu.matmul %1, %2, %cst {dimension_numbers = #tpu.dot_dimension_numbers<[1], [0], [0], [1], [0, 0, 1, 1], [], []>} : vector<128x32xbf16>, vector<32x256xbf16>, vector<128x256xf32> -> vector<128x256xf32>
    %c0_3 = arith.constant 0 : index
    %c0_4 = arith.constant 0 : index
    %4 = vector.load %arg3[%c0_3, %c0_4] : memref<1x256xf32, #tpu.memory_space<vmem>>, vector<1x256xf32>
    %5 = vector.broadcast %4 : vector<1x256xf32> to vector<128x256xf32>
    %6 = arith.addf %3, %5 : vector<128x256xf32>
    %cst_5 = arith.constant 0.000000e+00 : f32
    %7 = vector.broadcast %cst_5 : f32 to vector<128x256xf32>
    %8 = arith.maximumf %6, %7 : vector<128x256xf32>
    %9 = arith.truncf %8 : vector<128x256xf32> to vector<128x256xbf16>
    %c0_6 = arith.constant 0 : index
    %c0_7 = arith.constant 0 : index
    %10 = vector.load %arg4[%c0_6, %c0_7] : memref<256x256xbf16, #tpu.memory_space<vmem>>, vector<256x256xbf16>
    %cst_8 = arith.constant dense<0.000000e+00> : vector<128x256xf32>
    %11 = tpu.matmul %9, %10, %cst_8 {dimension_numbers = #tpu.dot_dimension_numbers<[1], [0], [0], [1], [0, 0, 1, 1], [], []>} : vector<128x256xbf16>, vector<256x256xbf16>, vector<128x256xf32> -> vector<128x256xf32>
    %c0_9 = arith.constant 0 : index
    %c0_10 = arith.constant 0 : index
    %12 = vector.load %arg5[%c0_9, %c0_10] : memref<1x256xf32, #tpu.memory_space<vmem>>, vector<1x256xf32>
    %13 = vector.broadcast %12 : vector<1x256xf32> to vector<128x256xf32>
    %14 = arith.addf %11, %13 : vector<128x256xf32>
    %cst_11 = arith.constant 0.000000e+00 : f32
    %15 = vector.broadcast %cst_11 : f32 to vector<128x256xf32>
    %16 = arith.maximumf %14, %15 : vector<128x256xf32>
    %17 = arith.truncf %16 : vector<128x256xf32> to vector<128x256xbf16>
    %c0_12 = arith.constant 0 : index
    %c0_13 = arith.constant 0 : index
    %18 = vector.load %arg6[%c0_12, %c0_13] : memref<256x16xbf16, #tpu.memory_space<vmem>>, vector<256x16xbf16>
    %cst_14 = arith.constant dense<0.000000e+00> : vector<128x16xf32>
    %19 = tpu.matmul %17, %18, %cst_14 {dimension_numbers = #tpu.dot_dimension_numbers<[1], [0], [0], [1], [0, 0, 1, 1], [], []>} : vector<128x256xbf16>, vector<256x16xbf16>, vector<128x16xf32> -> vector<128x16xf32>
    %c0_15 = arith.constant 0 : index
    %c0_16 = arith.constant 0 : index
    %20 = vector.load %arg7[%c0_15, %c0_16] : memref<1x16xf32, #tpu.memory_space<vmem>>, vector<1x16xf32>
    %21 = vector.broadcast %20 : vector<1x16xf32> to vector<128x16xf32>
    %22 = arith.addf %19, %21 : vector<128x16xf32>
    %c0_17 = arith.constant 0 : index
    %c0_18 = arith.constant 0 : index
    %23 = vector.load %arg8[%c0_17, %c0_18] : memref<128x16xf32, #tpu.memory_space<vmem>>, vector<128x16xf32>
    tpu.vector_store %arg8[%c0_17, %c0_18], %22 {strides = array<i32>} : memref<128x16xf32, #tpu.memory_space<vmem>>, vector<128x16xf32>,
    return
  }
  func.func @transform_0(%arg0: i32) -> (i32, i32) {
    %c0_i32 = arith.constant 0 : i32
    %c0_i32_0 = arith.constant 0 : i32
    return %arg0, %c0_i32 : i32, i32
  }
  func.func @transform_1(%arg0: i32) -> (i32, i32) {
    %c0_i32 = arith.constant 0 : i32
    %c0_i32_0 = arith.constant 0 : i32
    %c0_i32_1 = arith.constant 0 : i32
    return %c0_i32, %c0_i32_0 : i32, i32
  }
  func.func @transform_2(%arg0: i32) -> (i32, i32) {
    %c0_i32 = arith.constant 0 : i32
    %c0_i32_0 = arith.constant 0 : i32
    %c0_i32_1 = arith.constant 0 : i32
    return %c0_i32, %c0_i32_0 : i32, i32
  }
  func.func @transform_3(%arg0: i32) -> (i32, i32) {
    %c0_i32 = arith.constant 0 : i32
    %c0_i32_0 = arith.constant 0 : i32
    %c0_i32_1 = arith.constant 0 : i32
    return %c0_i32, %c0_i32_0 : i32, i32
  }
  func.func @transform_4(%arg0: i32) -> (i32, i32) {
    %c0_i32 = arith.constant 0 : i32
    %c0_i32_0 = arith.constant 0 : i32
    %c0_i32_1 = arith.constant 0 : i32
    return %c0_i32, %c0_i32_0 : i32, i32
  }
  func.func @transform_5(%arg0: i32) -> (i32, i32) {
    %c0_i32 = arith.constant 0 : i32
    %c0_i32_0 = arith.constant 0 : i32
    %c0_i32_1 = arith.constant 0 : i32
    return %c0_i32, %c0_i32_0 : i32, i32
  }
  func.func @transform_6(%arg0: i32) -> (i32, i32) {
    %c0_i32 = arith.constant 0 : i32
    %c0_i32_0 = arith.constant 0 : i32
    %c0_i32_1 = arith.constant 0 : i32
    return %c0_i32, %c0_i32_0 : i32, i32
  }
  func.func @transform_7(%arg0: i32) -> (i32, i32) {
    %c0_i32 = arith.constant 0 : i32
    %c0_i32_0 = arith.constant 0 : i32
    return %arg0, %c0_i32 : i32, i32
  }
}

</mosaic_0001>

<llo_original>
// kernel: stage2_mlp.1
$region0: #{stage2_mlp.1}
  #allocation0 [shape = 'u32[]', space=smem, size = 0x4, offset = 0x4, fixed_abs, tag = 'smem constant byte address 0x4 - core index']
  #allocation1 [shape = 'u32[144,128]{1,0:T(1,128)}', space=vmem, size = 0x12000, scoped, tag = 'internal scratch']
  %s0 = inlined_call_operand.vmem [shape: f32[128,32], index: 0, kind: input, shape index: {}]
  %s1 = inlined_call_operand.vmem [shape: bf16[32,256], index: 1, kind: input, shape index: {}]
  %s2 = inlined_call_operand.vmem [shape: f32[1,256], index: 2, kind: input, shape index: {}]
  %s3 = inlined_call_operand.vmem [shape: bf16[256,256], index: 3, kind: input, shape index: {}]
  %s4 = inlined_call_operand.vmem [shape: f32[1,256], index: 4, kind: input, shape index: {}]
  %s5 = inlined_call_operand.vmem [shape: bf16[256,16], index: 5, kind: input, shape index: {}]
  %s6 = inlined_call_operand.vmem [shape: f32[1,16], index: 6, kind: input, shape index: {}]
  %s7 = inlined_call_operand.vmem [shape: f32[128,16], index: 7, kind: output, shape index: {}]
  %s8 = sld [smem:[#allocation0]]
  $region38: #{stage2_mlp.1} parent=0
    _
  %s10 = ssub.s32 1, %s8
  %s11 = scalar_select 0, %s10, %s8
  // Predicated region
  $region2: #{stage2_mlp.1} parent=0 // pred_check
    _
  $region3: #{stage2_mlp.1} parent=0 // pred_check_branch
    %13 = sbr.rel (0) target = $region5
  $region4: #{stage2_mlp.1} parent=0 // pred_region
    _
  $region5: #{stage2_mlp.1} parent=0 // pred_fallthru
    _
  // Predicated region
  $region6: #{stage2_mlp.1} parent=0 // pred_check
    _
  $region7: #{stage2_mlp.1} parent=0 // pred_check_branch
    %15 = sbr.rel (0) target = $region9
  $region8: #{stage2_mlp.1} parent=0 // pred_region
    _
  $region9: #{stage2_mlp.1} parent=0 // pred_fallthru
    _
  // Predicated region
  $region10: #{stage2_mlp.1} parent=0 // pred_check
    _
  $region11: #{stage2_mlp.1} parent=0 // pred_check_branch
    %17 = sbr.rel (0) target = $region13
  $region12: #{stage2_mlp.1} parent=0 // pred_region
    _
  $region13: #{stage2_mlp.1} parent=0 // pred_fallthru
    _
  // Predicated region
  $region14: #{stage2_mlp.1} parent=0 // pred_check
    _
  $region15: #{stage2_mlp.1} parent=0 // pred_check_branch
    %19 = sbr.rel (0) target = $region17
  $region16: #{stage2_mlp.1} parent=0 // pred_region
    _
  $region17: #{stage2_mlp.1} parent=0 // pred_fallthru
    _
  // Predicated region
  $region18: #{stage2_mlp.1} parent=0 // pred_check
    _
  $region19: #{stage2_mlp.1} parent=0 // pred_check_branch
    %21 = sbr.rel (0) target = $region21
  $region20: #{stage2_mlp.1} parent=0 // pred_region
    _
  $region21: #{stage2_mlp.1} parent=0 // pred_fallthru
    _
  // Predicated region
  $region22: #{stage2_mlp.1} parent=0 // pred_check
    _
  $region23: #{stage2_mlp.1} parent=0 // pred_check_branch
    %23 = sbr.rel (0) target = $region25
  $region24: #{stage2_mlp.1} parent=0 // pred_region
    _
  $region25: #{stage2_mlp.1} parent=0 // pred_fallthru
    _
  // Predicated region
  $region26: #{stage2_mlp.1} parent=0 // pred_check
    _
  $region27: #{stage2_mlp.1} parent=0 // pred_check_branch
    %25 = sbr.rel (0) target = $region29
  $region28: #{stage2_mlp.1} parent=0 // pred_region
    _
  $region29: #{stage2_mlp.1} parent=0 // pred_fallthru
    _
  %v27 = vld [vmem:[%s0] sm:$0xff]
  %v28 = vld [vmem:[%s0 + $0x8] sm:$0xff]
  %v29 = vld [vmem:[%s0 + $0x10] sm:$0xff]
  %v30 = vld [vmem:[%s0 + $0x18] sm:$0xff]
  %v31 = vld [vmem:[%s0 + $0x20] sm:$0xff]
  %v32 = vld [vmem:[%s0 + $0x28] sm:$0xff]
  %v33 = vld [vmem:[%s0 + $0x30] sm:$0xff]
  %v34 = vld [vmem:[%s0 + $0x38] sm:$0xff]
  %v35 = vld [vmem:[%s0 + $0x40] sm:$0xff]
  %v36 = vld [vmem:[%s0 + $0x48] sm:$0xff]
  %v37 = vld [vmem:[%s0 + $0x50] sm:$0xff]
  %v38 = vld [vmem:[%s0 + $0x58] sm:$0xff]
  %v39 = vld [vmem:[%s0 + $0x60] sm:$0xff]
  %v40 = vld [vmem:[%s0 + $0x68] sm:$0xff]
  %v41 = vld [vmem:[%s0 + $0x70] sm:$0xff]
  %v42 = vld [vmem:[%s0 + $0x78] sm:$0xff]
  %v43 = vpack.c.bf16 %v28, %v27
  %v44 = vpack.c.bf16 %v30, %v29
  %v45 = vpack.c.bf16 %v32, %v31
  %v46 = vpack.c.bf16 %v34, %v33
  %v47 = vpack.c.bf16 %v36, %v35
  %v48 = vpack.c.bf16 %v38, %v37
  %v49 = vpack.c.bf16 %v40, %v39
  %v50 = vpack.c.bf16 %v42, %v41
  %v51 = vld [vmem:[%s1] sm:$0xff]
  %v52 = vld [vmem:[%s1 + $0x8] sm:$0xff]
  %v53 = vld [vmem:[%s1 + $0x10] sm:$0xff]
  %v54 = vld [vmem:[%s1 + $0x18] sm:$0xff]
  %v55 = vld [vmem:[%s2] sm:$0x3]
  %v57 = vlaneseq
  %v58 = vshrl.u32 %v57, 7
  %v59 = vsub.s32 0, %v58
  %v60 = vrot.slane %v55, %v59
  %v61 = vlaneseq
  %v62 = vshrl.u32 %v61, 7
  %v63 = vsub.s32 1, %v62
  %v64 = vrot.slane %v55, %v63
  %v71 = vunpack.c.l.b16 %v51
  %v72 = vunpack.c.h.b16 %v51
  %v73 = vunpack.c.l.b16 %v52
  %v74 = vunpack.c.h.b16 %v52
  %v75 = vunpack.c.l.b16 %v53
  %v76 = vunpack.c.h.b16 %v53
  %v77 = vunpack.c.l.b16 %v54
  %v78 = vunpack.c.h.b16 %v54
  %v79 = vpack.c.b16 %v73, %v71
  %v80 = vpack.c.b16 %v74, %v72
  %v81 = vpack.c.b16 %v77, %v75
  %v82 = vpack.c.b16 %v78, %v76
  %vm87 = vcmask 261120
  %v89 = vsel %vm87, %v43, 0
  %v92 = vsel %vm87, %v44, 0
  %v95 = vsel %vm87, %v45, 0
  %v98 = vsel %vm87, %v46, 0
  %v101 = vsel %vm87, %v47, 0
  %v104 = vsel %vm87, %v48, 0
  %v107 = vsel %vm87, %v49, 0
  %v110 = vsel %vm87, %v50, 0
  %112 = vmatprep.subr.bf16.mxu0 %v80
  %113 = vmatpush1.bf16.msra.mxu0 %v79
  %114 = vmatprep.subr.bf16.mxu0 %v82
  %115 = vmatpush1.bf16.msra.mxu0 %v81
  %116 = vmatprep.subr.bf16.mxu0 0
  %117 = vmatpush1.bf16.msra.mxu0 0
  %118 = vmatprep.subr.bf16.mxu0 0
  %119 = vmatpush1.bf16.msra.mxu0 0
  %120 = vmatprep.subr.bf16.mxu0 0
  %121 = vmatpush1.bf16.msra.mxu0 0
  %122 = vmatprep.subr.bf16.mxu0 0
  %123 = vmatpush1.bf16.msra.mxu0 0
  %124 = vmatprep.subr.bf16.mxu0 0
  %125 = vmatpush1.bf16.msra.mxu0 0
  %126 = vmatprep.subr.bf16.mxu0 0
  %127 = vmatpush1.bf16.msra.mxu0 0
  %128 = vmatprep.subr.bf16.mxu0 0
  %129 = vmatpush1.bf16.msra.mxu0 0
  %130 = vmatprep.subr.bf16.mxu0 0
  %131 = vmatpush1.bf16.msra.mxu0 0
  %132 = vmatprep.subr.bf16.mxu0 0
  %133 = vmatpush1.bf16.msra.mxu0 0
  %134 = vmatprep.subr.bf16.mxu0 0
  %135 = vmatpush1.bf16.msra.mxu0 0
  %136 = vmatprep.subr.bf16.mxu0 0
  %137 = vmatpush1.bf16.msra.mxu0 0
  %138 = vmatprep.subr.bf16.mxu0 0
  %139 = vmatpush1.bf16.msra.mxu0 0
  %140 = vmatprep.subr.bf16.mxu0 0
  %141 = vmatpush1.bf16.msra.mxu0 0
  %142 = vmatprep.subr.bf16.mxu0 0
  %143 = vmatpush1.bf16.msra.mxu0 0
  %144 = vmatprep.mubr.bf16.mxu0 0
  %145 = vmatmul.mubr.bf16.gmra.mrb[0].mxu0 %v89
  %v146 = vpop.f32.mrb[0].mxu0
  %v147 = vadd.f32 %v60, %v146
  %v148 = vpop.f32.mrb[0].mxu0
  %v149 = vadd.f32 %v64, %v148
  %v150 = vpop.f32.mrb[0].mxu0
  %v151 = vadd.f32 %v60, %v150
  %v152 = vpop.f32.mrb[0].mxu0
  %v153 = vadd.f32 %v64, %v152
  %154 = vmatprep.mubr.bf16.mxu0 0
  %155 = vmatmul.mubr.bf16.gmra.mrb[0].mxu0 %v92
  %v156 = vpop.f32.mrb[0].mxu0
  %v157 = vadd.f32 %v60, %v156
  %v158 = vpop.f32.mrb[0].mxu0
  %v159 = vadd.f32 %v64, %v158
  %v160 = vpop.f32.mrb[0].mxu0
  %v161 = vadd.f32 %v60, %v160
  %v162 = vpop.f32.mrb[0].mxu0
  %v163 = vadd.f32 %v64, %v162
  %164 = vmatprep.mubr.bf16.mxu0 0
  %165 = vmatmul.mubr.bf16.gmra.mrb[0].mxu0 %v95
  %v166 = vpop.f32.mrb[0].mxu0
  %v167 = vadd.f32 %v60, %v166
  %v168 = vpop.f32.mrb[0].mxu0
  %v169 = vadd.f32 %v64, %v168
  %v170 = vpop.f32.mrb[0].mxu0
  %v171 = vadd.f32 %v60, %v170
  %v172 = vpop.f32.mrb[0].mxu0
  %v173 = vadd.f32 %v64, %v172
  %174 = vmatprep.mubr.bf16.mxu0 0
  %175 = vmatmul.mubr.bf16.gmra.mrb[0].mxu0 %v98
  %v176 = vpop.f32.mrb[0].mxu0
  %v177 = vadd.f32 %v60, %v176
  %v178 = vpop.f32.mrb[0].mxu0
  %v179 = vadd.f32 %v64, %v178
  %v180 = vpop.f32.mrb[0].mxu0
  %v181 = vadd.f32 %v60, %v180
  %v182 = vpop.f32.mrb[0].mxu0
  %v183 = vadd.f32 %v64, %v182
  %184 = vmatprep.mubr.bf16.mxu0 0
  %185 = vmatmul.mubr.bf16.gmra.mrb[0].mxu0 %v101
  %v186 = vpop.f32.mrb[0].mxu0
  %v187 = vadd.f32 %v60, %v186
  %v188 = vpop.f32.mrb[0].mxu0
  %v189 = vadd.f32 %v64, %v188
  %v190 = vpop.f32.mrb[0].mxu0
  %v191 = vadd.f32 %v60, %v190
  %v192 = vpop.f32.mrb[0].mxu0
  %v193 = vadd.f32 %v64, %v192
  %194 = vmatprep.mubr.bf16.mxu0 0
  %195 = vmatmul.mubr.bf16.gmra.mrb[0].mxu0 %v104
  %v196 = vpop.f32.mrb[0].mxu0
  %v197 = vadd.f32 %v60, %v196
  %v198 = vpop.f32.mrb[0].mxu0
  %v199 = vadd.f32 %v64, %v198
  %v200 = vpop.f32.mrb[0].mxu0
  %v201 = vadd.f32 %v60, %v200
  %v202 = vpop.f32.mrb[0].mxu0
  %v203 = vadd.f32 %v64, %v202
  %204 = vmatprep.mubr.bf16.mxu0 0
  %205 = vmatmul.mubr.bf16.gmra.mrb[0].mxu0 %v107
  %v206 = vpop.f32.mrb[0].mxu0
  %v207 = vadd.f32 %v60, %v206
  %v208 = vpop.f32.mrb[0].mxu0
  %v209 = vadd.f32 %v64, %v208
  %v210 = vpop.f32.mrb[0].mxu0
  %v211 = vadd.f32 %v60, %v210
  %v212 = vpop.f32.mrb[0].mxu0
  %v213 = vadd.f32 %v64, %v212
  %214 = vmatprep.mubr.bf16.mxu0 0
  %215 = vmatmul.mubr.bf16.gmra.mrb[0].mxu0 %v110
  %v216 = vpop.f32.mrb[0].mxu0
  %v217 = vadd.f32 %v60, %v216
  %v218 = vpop.f32.mrb[0].mxu0
  %v219 = vadd.f32 %v64, %v218
  %v220 = vpop.f32.mrb[0].mxu0
  %v221 = vadd.f32 %v60, %v220
  %v222 = vpop.f32.mrb[0].mxu0
  %v223 = vadd.f32 %v64, %v222
  %224 = vdwg.mxu0
  %v225 = vmax.f32 %v147, 0.0
  %v226 = vmax.f32 %v149, 0.0
  %v227 = vmax.f32 %v151, 0.0
  %v228 = vmax.f32 %v153, 0.0
  %v229 = vmax.f32 %v157, 0.0
  %v230 = vmax.f32 %v159, 0.0
  %v231 = vmax.f32 %v161, 0.0
  %v232 = vmax.f32 %v163, 0.0
  %v233 = vmax.f32 %v167, 0.0
  %v234 = vmax.f32 %v169, 0.0
  %v235 = vmax.f32 %v171, 0.0
  %v236 = vmax.f32 %v173, 0.0
  %v237 = vmax.f32 %v177, 0.0
  %v238 = vmax.f32 %v179, 0.0
  %v239 = vmax.f32 %v181, 0.0
  %v240 = vmax.f32 %v183, 0.0
  %v241 = vmax.f32 %v187, 0.0
  %v242 = vmax.f32 %v189, 0.0
  %v243 = vmax.f32 %v191, 0.0
  %v244 = vmax.f32 %v193, 0.0
  %v245 = vmax.f32 %v197, 0.0
  %v246 = vmax.f32 %v199, 0.0
  %v247 = vmax.f32 %v201, 0.0
  %v248 = vmax.f32 %v203, 0.0
  %v249 = vmax.f32 %v207, 0.0
  %v250 = vmax.f32 %v209, 0.0
  %v251 = vmax.f32 %v211, 0.0
  %v252 = vmax.f32 %v213, 0.0
  %v253 = vmax.f32 %v217, 0.0
  %v254 = vmax.f32 %v219, 0.0
  %v255 = vmax.f32 %v221, 0.0
  %v256 = vmax.f32 %v223, 0.0
  %v257 = vpack.c.bf16 %v227, %v225
  %v258 = vpack.c.bf16 %v228, %v226
  %v259 = vpack.c.bf16 %v231, %v229
  %v260 = vpack.c.bf16 %v232, %v230
  %v261 = vpack.c.bf16 %v235, %v233
  %v262 = vpack.c.bf16 %v236, %v234
  %v263 = vpack.c.bf16 %v239, %v237
  %v264 = vpack.c.bf16 %v240, %v238
  %v265 = vpack.c.bf16 %v243, %v241
  %v266 = vpack.c.bf16 %v244, %v242
  %v267 = vpack.c.bf16 %v247, %v245
  %v268 = vpack.c.bf16 %v248, %v246
  %v269 = vpack.c.bf16 %v251, %v249
  %v270 = vpack.c.bf16 %v252, %v250
  %v271 = vpack.c.bf16 %v255, %v253
  %v272 = vpack.c.bf16 %v256, %v254
  %v273 = vld [vmem:[%s3] sm:$0xff]
  %v274 = vld [vmem:[%s3 + $0x8] sm:$0xff]
  %v275 = vld [vmem:[%s3 + $0x10] sm:$0xff]
  %v276 = vld [vmem:[%s3 + $0x18] sm:$0xff]
  %v277 = vld [vmem:[%s3 + $0x20] sm:$0xff]
  %v278 = vld [vmem:[%s3 + $0x28] sm:$0xff]
  %v279 = vld [vmem:[%s3 + $0x30] sm:$0xff]
  %v280 = vld [vmem:[%s3 + $0x38] sm:$0xff]
  %v281 = vld [vmem:[%s3 + $0x40] sm:$0xff]
  %v282 = vld [vmem:[%s3 + $0x48] sm:$0xff]
  %v283 = vld [vmem:[%s3 + $0x50] sm:$0xff]
  %v284 = vld [vmem:[%s3 + $0x58] sm:$0xff]
  %v285 = vld [vmem:[%s3 + $0x60] sm:$0xff]
  %v286 = vld [vmem:[%s3 + $0x68] sm:$0xff]
  %v287 = vld [vmem:[%s3 + $0x70] sm:$0xff]
  %v288 = vld [vmem:[%s3 + $0x78] sm:$0xff]
  %v289 = vld [vmem:[%s3 + $0x80] sm:$0xff]
  %v290 = vld [vmem:[%s3 + $0x88] sm:$0xff]
  %v291 = vld [vmem:[%s3 + $0x90] sm:$0xff]
  %v292 = vld [vmem:[%s3 + $0x98] sm:$0xff]
  %v293 = vld [vmem:[%s3 + $0xa0] sm:$0xff]
  %v294 = vld [vmem:[%s3 + $0xa8] sm:$0xff]
  %v295 = vld [vmem:[%s3 + $0xb0] sm:$0xff]
  %v296 = vld [vmem:[%s3 + $0xb8] sm:$0xff]
  %v297 = vld [vmem:[%s3 + $0xc0] sm:$0xff]
  %v298 = vld [vmem:[%s3 + $0xc8] sm:$0xff]
  %v299 = vld [vmem:[%s3 + $0xd0] sm:$0xff]
  %v300 = vld [vmem:[%s3 + $0xd8] sm:$0xff]
  %v301 = vld [vmem:[%s3 + $0xe0] sm:$0xff]
  %v302 = vld [vmem:[%s3 + $0xe8] sm:$0xff]
  %v303 = vld [vmem:[%s3 + $0xf0] sm:$0xff]
  %v304 = vld [vmem:[%s3 + $0xf8] sm:$0xff]
  %v305 = vld [vmem:[%s4] sm:$0x3]
  %v307 = vlaneseq
  %v308 = vshrl.u32 %v307, 7
  %v309 = vsub.s32 0, %v308
  %v310 = vrot.slane %v305, %v309
  %v311 = vlaneseq
  %v312 = vshrl.u32 %v311, 7
  %v313 = vsub.s32 1, %v312
  %v314 = vrot.slane %v305, %v313
  %v349 = vunpack.c.l.b16 %v273
  %v350 = vunpack.c.h.b16 %v273
  %v351 = vunpack.c.l.b16 %v274
  %v352 = vunpack.c.h.b16 %v274
  %v353 = vunpack.c.l.b16 %v275
  %v354 = vunpack.c.h.b16 %v275
  %v355 = vunpack.c.l.b16 %v276
  %v356 = vunpack.c.h.b16 %v276
  %v357 = vunpack.c.l.b16 %v277
  %v358 = vunpack.c.h.b16 %v277
  %v359 = vunpack.c.l.b16 %v278
  %v360 = vunpack.c.h.b16 %v278
  %v361 = vunpack.c.l.b16 %v279
  %v362 = vunpack.c.h.b16 %v279
  %v363 = vunpack.c.l.b16 %v280
  %v364 = vunpack.c.h.b16 %v280
  %v365 = vunpack.c.l.b16 %v281
  %v366 = vunpack.c.h.b16 %v281
  %v367 = vunpack.c.l.b16 %v282
  %v368 = vunpack.c.h.b16 %v282
  %v369 = vunpack.c.l.b16 %v283
  %v370 = vunpack.c.h.b16 %v283
  %v371 = vunpack.c.l.b16 %v284
  %v372 = vunpack.c.h.b16 %v284
  %v373 = vunpack.c.l.b16 %v285
  %v374 = vunpack.c.h.b16 %v285
  %v375 = vunpack.c.l.b16 %v286
  %v376 = vunpack.c.h.b16 %v286
  %v377 = vunpack.c.l.b16 %v287
  %v378 = vunpack.c.h.b16 %v287
  %v379 = vunpack.c.l.b16 %v288
  %v380 = vunpack.c.h.b16 %v288
  %v381 = vunpack.c.l.b16 %v289
  %v382 = vunpack.c.h.b16 %v289
  %v383 = vunpack.c.l.b16 %v290
  %v384 = vunpack.c.h.b16 %v290
  %v385 = vunpack.c.l.b16 %v291
  %v386 = vunpack.c.h.b16 %v291
  %v387 = vunpack.c.l.b16 %v292
  %v388 = vunpack.c.h.b16 %v292
  %v389 = vunpack.c.l.b16 %v293
  %v390 = vunpack.c.h.b16 %v293
  %v391 = vunpack.c.l.b16 %v294
  %v392 = vunpack.c.h.b16 %v294
  %v393 = vunpack.c.l.b16 %v295
  %v394 = vunpack.c.h.b16 %v295
  %v395 = vunpack.c.l.b16 %v296
  %v396 = vunpack.c.h.b16 %v296
  %v397 = vunpack.c.l.b16 %v297
  %v398 = vunpack.c.h.b16 %v297
  %v399 = vunpack.c.l.b16 %v298
  %v400 = vunpack.c.h.b16 %v298
  %v401 = vunpack.c.l.b16 %v299
  %v402 = vunpack.c.h.b16 %v299
  %v403 = vunpack.c.l.b16 %v300
  %v404 = vunpack.c.h.b16 %v300
  %v405 = vunpack.c.l.b16 %v301
  %v406 = vunpack.c.h.b16 %v301
  %v407 = vunpack.c.l.b16 %v302
  %v408 = vunpack.c.h.b16 %v302
  %v409 = vunpack.c.l.b16 %v303
  %v410 = vunpack.c.h.b16 %v303
  %v411 = vunpack.c.l.b16 %v304
  %v412 = vunpack.c.h.b16 %v304
  %v413 = vpack.c.b16 %v351, %v349
  %v414 = vpack.c.b16 %v352, %v350
  %v415 = vpack.c.b16 %v355, %v353
  %v416 = vpack.c.b16 %v356, %v354
  %v417 = vpack.c.b16 %v359, %v357
  %v418 = vpack.c.b16 %v360, %v358
  %v419 = vpack.c.b16 %v363, %v361
  %v420 = vpack.c.b16 %v364, %v362
  %v421 = vpack.c.b16 %v367, %v365
  %v422 = vpack.c.b16 %v368, %v366
  %v423 = vpack.c.b16 %v371, %v369
  %v424 = vpack.c.b16 %v372, %v370
  %v425 = vpack.c.b16 %v375, %v373
  %v426 = vpack.c.b16 %v376, %v374
  %v427 = vpack.c.b16 %v379, %v377
  %v428 = vpack.c.b16 %v380, %v378
  %v429 = vpack.c.b16 %v383, %v381
  %v430 = vpack.c.b16 %v384, %v382
  %v431 = vpack.c.b16 %v387, %v385
  %v432 = vpack.c.b16 %v388, %v386
  %v433 = vpack.c.b16 %v391, %v389
  %v434 = vpack.c.b16 %v392, %v390
  %v435 = vpack.c.b16 %v395, %v393
  %v436 = vpack.c.b16 %v396, %v394
  %v437 = vpack.c.b16 %v399, %v397
  %v438 = vpack.c.b16 %v400, %v398
  %v439 = vpack.c.b16 %v403, %v401
  %v440 = vpack.c.b16 %v404, %v402
  %v441 = vpack.c.b16 %v407, %v405
  %v442 = vpack.c.b16 %v408, %v406
  %v443 = vpack.c.b16 %v411, %v409
  %v444 = vpack.c.b16 %v412, %v410
  %477 = vmatprep.subr.bf16.mxu0 %v414
  %478 = vmatpush1.bf16.msra.mxu0 %v413
  %479 = vmatprep.subr.bf16.mxu0 %v416
  %480 = vmatpush1.bf16.msra.mxu0 %v415
  %481 = vmatprep.subr.bf16.mxu0 %v418
  %482 = vmatpush1.bf16.msra.mxu0 %v417
  %483 = vmatprep.subr.bf16.mxu0 %v420
  %484 = vmatpush1.bf16.msra.mxu0 %v419
  %485 = vmatprep.subr.bf16.mxu0 %v422
  %486 = vmatpush1.bf16.msra.mxu0 %v421
  %487 = vmatprep.subr.bf16.mxu0 %v424
  %488 = vmatpush1.bf16.msra.mxu0 %v423
  %489 = vmatprep.subr.bf16.mxu0 %v426
  %490 = vmatpush1.bf16.msra.mxu0 %v425
  %491 = vmatprep.subr.bf16.mxu0 %v428
  %492 = vmatpush1.bf16.msra.mxu0 %v427
  %493 = vmatprep.subr.bf16.mxu0 %v430
  %494 = vmatpush1.bf16.msra.mxu0 %v429
  %495 = vmatprep.subr.bf16.mxu0 %v432
  %496 = vmatpush1.bf16.msra.mxu0 %v431
  %497 = vmatprep.subr.bf16.mxu0 %v434
  %498 = vmatpush1.bf16.msra.mxu0 %v433
  %499 = vmatprep.subr.bf16.mxu0 %v436
  %500 = vmatpush1.bf16.msra.mxu0 %v435
  %501 = vmatprep.subr.bf16.mxu0 %v438
  %502 = vmatpush1.bf16.msra.mxu0 %v437
  %503 = vmatprep.subr.bf16.mxu0 %v440
  %504 = vmatpush1.bf16.msra.mxu0 %v439
  %505 = vmatprep.subr.bf16.mxu0 %v442
  %506 = vmatpush1.bf16.msra.mxu0 %v441
  %507 = vmatprep.subr.bf16.mxu0 %v444
  %508 = vmatpush1.bf16.msra.mxu0 %v443
  %509 = vmatprep.mubr.bf16.mxu0 %v258
  %510 = vmatmul.mubr.bf16.gmra.mrb[0].mxu0 %v257
  %v511 = vpop.f32.mrb[0].mxu0
  %v512 = vadd.f32 %v310, %v511
  %v513 = vpop.f32.mrb[0].mxu0
  %v514 = vadd.f32 %v314, %v513
  %v515 = vpop.f32.mrb[0].mxu0
  %v516 = vadd.f32 %v310, %v515
  %v517 = vpop.f32.mrb[0].mxu0
  %v518 = vadd.f32 %v314, %v517
  %519 = vmatprep.mubr.bf16.mxu0 %v260
  %520 = vmatmul.mubr.bf16.gmra.mrb[0].mxu0 %v259
  %v521 = vpop.f32.mrb[0].mxu0
  %v522 = vadd.f32 %v310, %v521
  %v523 = vpop.f32.mrb[0].mxu0
  %v524 = vadd.f32 %v314, %v523
  %v525 = vpop.f32.mrb[0].mxu0
  %v526 = vadd.f32 %v310, %v525
  %v527 = vpop.f32.mrb[0].mxu0
  %v528 = vadd.f32 %v314, %v527
  %529 = vmatprep.mubr.bf16.mxu0 %v262
  %530 = vmatmul.mubr.bf16.gmra.mrb[0].mxu0 %v261
  %v531 = vpop.f32.mrb[0].mxu0
  %v532 = vadd.f32 %v310, %v531
  %v533 = vpop.f32.mrb[0].mxu0
  %v534 = vadd.f32 %v314, %v533
  %v535 = vpop.f32.mrb[0].mxu0
  %v536 = vadd.f32 %v310, %v535
  %v537 = vpop.f32.mrb[0].mxu0
  %v538 = vadd.f32 %v314, %v537
  %539 = vmatprep.mubr.bf16.mxu0 %v264
  %540 = vmatmul.mubr.bf16.gmra.mrb[0].mxu0 %v263
  %v541 = vpop.f32.mrb[0].mxu0
  %v542 = vadd.f32 %v310, %v541
  %v543 = vpop.f32.mrb[0].mxu0
  %v544 = vadd.f32 %v314, %v543
  %v545 = vpop.f32.mrb[0].mxu0
  %v546 = vadd.f32 %v310, %v545
  %v547 = vpop.f32.mrb[0].mxu0
  %v548 = vadd.f32 %v314, %v547
  %549 = vmatprep.mubr.bf16.mxu0 %v266
  %550 = vmatmul.mubr.bf16.gmra.mrb[0].mxu0 %v265
  %v551 = vpop.f32.mrb[0].mxu0
  %v552 = vadd.f32 %v310, %v551
  %v553 = vpop.f32.mrb[0].mxu0
  %v554 = vadd.f32 %v314, %v553
  %v555 = vpop.f32.mrb[0].mxu0
  %v556 = vadd.f32 %v310, %v555
  %v557 = vpop.f32.mrb[0].mxu0
  %v558 = vadd.f32 %v314, %v557
  %559 = vmatprep.mubr.bf16.mxu0 %v268
  %560 = vmatmul.mubr.bf16.gmra.mrb[0].mxu0 %v267
  %v561 = vpop.f32.mrb[0].mxu0
  %v562 = vadd.f32 %v310, %v561
  %v563 = vpop.f32.mrb[0].mxu0
  %v564 = vadd.f32 %v314, %v563
  %v565 = vpop.f32.mrb[0].mxu0
  %v566 = vadd.f32 %v310, %v565
  %v567 = vpop.f32.mrb[0].mxu0
  %v568 = vadd.f32 %v314, %v567
  %569 = vmatprep.mubr.bf16.mxu0 %v270
  %570 = vmatmul.mubr.bf16.gmra.mrb[0].mxu0 %v269
  %v571 = vpop.f32.mrb[0].mxu0
  %v572 = vadd.f32 %v310, %v571
  %v573 = vpop.f32.mrb[0].mxu0
  %v574 = vadd.f32 %v314, %v573
  %v575 = vpop.f32.mrb[0].mxu0
  %v576 = vadd.f32 %v310, %v575
  %v577 = vpop.f32.mrb[0].mxu0
  %v578 = vadd.f32 %v314, %v577
  %579 = vmatprep.mubr.bf16.mxu0 %v272
  %580 = vmatmul.mubr.bf16.gmra.mrb[0].mxu0 %v271
  %v581 = vpop.f32.mrb[0].mxu0
  %v582 = vadd.f32 %v310, %v581
  %v583 = vpop.f32.mrb[0].mxu0
  %v584 = vadd.f32 %v314, %v583
  %v585 = vpop.f32.mrb[0].mxu0
  %v586 = vadd.f32 %v310, %v585
  %v587 = vpop.f32.mrb[0].mxu0
  %v588 = vadd.f32 %v314, %v587
  %589 = vdwg.mxu0
  %v590 = vmax.f32 %v512, 0.0
  %v591 = vmax.f32 %v514, 0.0
  %v592 = vmax.f32 %v516, 0.0
  %v593 = vmax.f32 %v518, 0.0
  %v594 = vmax.f32 %v522, 0.0
  %v595 = vmax.f32 %v524, 0.0
  %v596 = vmax.f32 %v526, 0.0
  %v597 = vmax.f32 %v528, 0.0
  %v598 = vmax.f32 %v532, 0.0
  %v599 = vmax.f32 %v534, 0.0
  %v600 = vmax.f32 %v536, 0.0
  %v601 = vmax.f32 %v538, 0.0
  %v602 = vmax.f32 %v542, 0.0
  %v603 = vmax.f32 %v544, 0.0
  %v604 = vmax.f32 %v546, 0.0
  %v605 = vmax.f32 %v548, 0.0
  %v606 = vmax.f32 %v552, 0.0
  %v607 = vmax.f32 %v554, 0.0
  %v608 = vmax.f32 %v556, 0.0
  %v609 = vmax.f32 %v558, 0.0
  %v610 = vmax.f32 %v562, 0.0
  %v611 = vmax.f32 %v564, 0.0
  %v612 = vmax.f32 %v566, 0.0
  %v613 = vmax.f32 %v568, 0.0
  %v614 = vmax.f32 %v572, 0.0
  %v615 = vmax.f32 %v574, 0.0
  %v616 = vmax.f32 %v576, 0.0
  %v617 = vmax.f32 %v578, 0.0
  %v618 = vmax.f32 %v582, 0.0
  %v619 = vmax.f32 %v584, 0.0
  %v620 = vmax.f32 %v586, 0.0
  %v621 = vmax.f32 %v588, 0.0
  %v622 = vpack.c.bf16 %v592, %v590
  %v623 = vpack.c.bf16 %v593, %v591
  %v624 = vpack.c.bf16 %v596, %v594
  %v625 = vpack.c.bf16 %v597, %v595
  %v626 = vpack.c.bf16 %v600, %v598
  %v627 = vpack.c.bf16 %v601, %v599
  %v628 = vpack.c.bf16 %v604, %v602
  %v629 = vpack.c.bf16 %v605, %v603
  %v630 = vpack.c.bf16 %v608, %v606
  %v631 = vpack.c.bf16 %v609, %v607
  %v632 = vpack.c.bf16 %v612, %v610
  %v633 = vpack.c.bf16 %v613, %v611
  %v634 = vpack.c.bf16 %v616, %v614
  %v635 = vpack.c.bf16 %v617, %v615
  %v636 = vpack.c.bf16 %v620, %v618
  %v637 = vpack.c.bf16 %v621, %v619
  %v638 = vld [vmem:[%s5] sm:$0xf]
  %v639 = vld [vmem:[%s5 + $0x4] sm:$0xf]
  %v640 = vld [vmem:[%s5 + $0x8] sm:$0xf]
  %v641 = vld [vmem:[%s5 + $0xc] sm:$0xf]
  %v642 = vld [vmem:[%s5 + $0x10] sm:$0xf]
  %v643 = vld [vmem:[%s5 + $0x14] sm:$0xf]
  %v644 = vld [vmem:[%s5 + $0x18] sm:$0xf]
  %v645 = vld [vmem:[%s5 + $0x1c] sm:$0xf]
  %v646 = vld [vmem:[%s5 + $0x20] sm:$0xf]
  %v647 = vld [vmem:[%s5 + $0x24] sm:$0xf]
  %v648 = vld [vmem:[%s5 + $0x28] sm:$0xf]
  %v649 = vld [vmem:[%s5 + $0x2c] sm:$0xf]
  %v650 = vld [vmem:[%s5 + $0x30] sm:$0xf]
  %v651 = vld [vmem:[%s5 + $0x34] sm:$0xf]
  %v652 = vld [vmem:[%s5 + $0x38] sm:$0xf]
  %v653 = vld [vmem:[%s5 + $0x3c] sm:$0xf]
  %v654 = vld [vmem:[%s5 + $0x40] sm:$0xf]
  %v655 = vld [vmem:[%s5 + $0x44] sm:$0xf]
  %v656 = vld [vmem:[%s5 + $0x48] sm:$0xf]
  %v657 = vld [vmem:[%s5 + $0x4c] sm:$0xf]
  %v658 = vld [vmem:[%s5 + $0x50] sm:$0xf]
  %v659 = vld [vmem:[%s5 + $0x54] sm:$0xf]
  %v660 = vld [vmem:[%s5 + $0x58] sm:$0xf]
  %v661 = vld [vmem:[%s5 + $0x5c] sm:$0xf]
  %v662 = vld [vmem:[%s5 + $0x60] sm:$0xf]
  %v663 = vld [vmem:[%s5 + $0x64] sm:$0xf]
  %v664 = vld [vmem:[%s5 + $0x68] sm:$0xf]
  %v665 = vld [vmem:[%s5 + $0x6c] sm:$0xf]
  %v666 = vld [vmem:[%s5 + $0x70] sm:$0xf]
  %v667 = vld [vmem:[%s5 + $0x74] sm:$0xf]
  %v668 = vld [vmem:[%s5 + $0x78] sm:$0xf]
  %v669 = vld [vmem:[%s5 + $0x7c] sm:$0xf]
  %v670 = vld [vmem:[%s6] sm:$0x1]
  %v672 = vlaneseq
  %v673 = vshrl.u32 %v672, 7
  %v674 = vsub.s32 0, %v673
  %v675 = vrot.slane %v670, %v674
  %v709 = vunpack.c.l.b16 %v638
  %v710 = vunpack.c.l.b16 %v639
  %v711 = vunpack.c.l.b16 %v640
  %v712 = vunpack.c.l.b16 %v641
  %v713 = vunpack.c.l.b16 %v642
  %v714 = vunpack.c.l.b16 %v643
  %v715 = vunpack.c.l.b16 %v644
  %v716 = vunpack.c.l.b16 %v645
  %v717 = vunpack.c.l.b16 %v646
  %v718 = vunpack.c.l.b16 %v647
  %v719 = vunpack.c.l.b16 %v648
  %v720 = vunpack.c.l.b16 %v649
  %v721 = vunpack.c.l.b16 %v650
  %v722 = vunpack.c.l.b16 %v651
  %v723 = vunpack.c.l.b16 %v652
  %v724 = vunpack.c.l.b16 %v653
  %v725 = vunpack.c.l.b16 %v654
  %v726 = vunpack.c.l.b16 %v655
  %v727 = vunpack.c.l.b16 %v656
  %v728 = vunpack.c.l.b16 %v657
  %v729 = vunpack.c.l.b16 %v658
  %v730 = vunpack.c.l.b16 %v659
  %v731 = vunpack.c.l.b16 %v660
  %v732 = vunpack.c.l.b16 %v661
  %v733 = vunpack.c.l.b16 %v662
  %v734 = vunpack.c.l.b16 %v663
  %v735 = vunpack.c.l.b16 %v664
  %v736 = vunpack.c.l.b16 %v665
  %v737 = vunpack.c.l.b16 %v666
  %v738 = vunpack.c.l.b16 %v667
  %v739 = vunpack.c.l.b16 %v668
  %v740 = vunpack.c.l.b16 %v669
  %v741 = vpack.c.b16 %v710, %v709
  %v742 = vpack.c.b16 %v712, %v711
  %v743 = vpack.c.b16 %v714, %v713
  %v744 = vpack.c.b16 %v716, %v715
  %v745 = vpack.c.b16 %v718, %v717
  %v746 = vpack.c.b16 %v720, %v719
  %v747 = vpack.c.b16 %v722, %v721
  %v748 = vpack.c.b16 %v724, %v723
  %v749 = vpack.c.b16 %v726, %v725
  %v750 = vpack.c.b16 %v728, %v727
  %v751 = vpack.c.b16 %v730, %v729
  %v752 = vpack.c.b16 %v732, %v731
  %v753 = vpack.c.b16 %v734, %v733
  %v754 = vpack.c.b16 %v736, %v735
  %v755 = vpack.c.b16 %v738, %v737
  %v756 = vpack.c.b16 %v740, %v739
  %773 = vmatprep.subr.bf16.mxu0 0
  %774 = vmatpush1.bf16.msra.mxu0 %v741
  %775 = vmatprep.subr.bf16.mxu0 0
  %776 = vmatpush1.bf16.msra.mxu0 %v742
  %777 = vmatprep.subr.bf16.mxu0 0
  %778 = vmatpush1.bf16.msra.mxu0 %v743
  %779 = vmatprep.subr.bf16.mxu0 0
  %780 = vmatpush1.bf16.msra.mxu0 %v744
  %781 = vmatprep.subr.bf16.mxu0 0
  %782 = vmatpush1.bf16.msra.mxu0 %v745
  %783 = vmatprep.subr.bf16.mxu0 0
  %784 = vmatpush1.bf16.msra.mxu0 %v746
  %785 = vmatprep.subr.bf16.mxu0 0
  %786 = vmatpush1.bf16.msra.mxu0 %v747
  %787 = vmatprep.subr.bf16.mxu0 0
  %788 = vmatpush1.bf16.msra.mxu0 %v748
  %789 = vmatprep.subr.bf16.mxu0 0
  %790 = vmatpush1.bf16.msra.mxu0 %v749
  %791 = vmatprep.subr.bf16.mxu0 0
  %792 = vmatpush1.bf16.msra.mxu0 %v750
  %793 = vmatprep.subr.bf16.mxu0 0
  %794 = vmatpush1.bf16.msra.mxu0 %v751
  %795 = vmatprep.subr.bf16.mxu0 0
  %796 = vmatpush1.bf16.msra.mxu0 %v752
  %797 = vmatprep.subr.bf16.mxu0 0
  %798 = vmatpush1.bf16.msra.mxu0 %v753
  %799 = vmatprep.subr.bf16.mxu0 0
  %800 = vmatpush1.bf16.msra.mxu0 %v754
  %801 = vmatprep.subr.bf16.mxu0 0
  %802 = vmatpush1.bf16.msra.mxu0 %v755
  %803 = vmatprep.subr.bf16.mxu0 0
  %804 = vmatpush1.bf16.msra.mxu0 %v756
  %805 = vmatprep.mubr.bf16.mxu0 %v623
  %806 = vmatmul.mubr.bf16.gmra.mrb[0].mxu0 %v622
  %v807 = vpop.f32.mrb[0].mxu0
  %v808 = vadd.f32 %v675, %v807
  %v809 = vpop.f32.mrb[0].mxu0
  %v810 = vpop.f32.mrb[0].mxu0
  %v811 = vadd.f32 %v675, %v810
  %v812 = vpop.f32.mrb[0].mxu0
  %813 = vmatprep.mubr.bf16.mxu0 %v625
  %814 = vmatmul.mubr.bf16.gmra.mrb[0].mxu0 %v624
  %v815 = vpop.f32.mrb[0].mxu0
  %v816 = vadd.f32 %v675, %v815
  %v817 = vpop.f32.mrb[0].mxu0
  %v818 = vpop.f32.mrb[0].mxu0
  %v819 = vadd.f32 %v675, %v818
  %v820 = vpop.f32.mrb[0].mxu0
  %821 = vmatprep.mubr.bf16.mxu0 %v627
  %822 = vmatmul.mubr.bf16.gmra.mrb[0].mxu0 %v626
  %v823 = vpop.f32.mrb[0].mxu0
  %v824 = vadd.f32 %v675, %v823
  %v825 = vpop.f32.mrb[0].mxu0
  %v826 = vpop.f32.mrb[0].mxu0
  %v827 = vadd.f32 %v675, %v826
  %v828 = vpop.f32.mrb[0].mxu0
  %829 = vmatprep.mubr.bf16.mxu0 %v629
  %830 = vmatmul.mubr.bf16.gmra.mrb[0].mxu0 %v628
  %v831 = vpop.f32.mrb[0].mxu0
  %v832 = vadd.f32 %v675, %v831
  %v833 = vpop.f32.mrb[0].mxu0
  %v834 = vpop.f32.mrb[0].mxu0
  %v835 = vadd.f32 %v675, %v834
  %v836 = vpop.f32.mrb[0].mxu0
  %837 = vmatprep.mubr.bf16.mxu0 %v631
  %838 = vmatmul.mubr.bf16.gmra.mrb[0].mxu0 %v630
  %v839 = vpop.f32.mrb[0].mxu0
  %v840 = vadd.f32 %v675, %v839
  %v841 = vpop.f32.mrb[0].mxu0
  %v842 = vpop.f32.mrb[0].mxu0
  %v843 = vadd.f32 %v675, %v842
  %v844 = vpop.f32.mrb[0].mxu0
  %845 = vmatprep.mubr.bf16.mxu0 %v633
  %846 = vmatmul.mubr.bf16.gmra.mrb[0].mxu0 %v632
  %v847 = vpop.f32.mrb[0].mxu0
  %v848 = vadd.f32 %v675, %v847
  %v849 = vpop.f32.mrb[0].mxu0
  %v850 = vpop.f32.mrb[0].mxu0
  %v851 = vadd.f32 %v675, %v850
  %v852 = vpop.f32.mrb[0].mxu0
  %853 = vmatprep.mubr.bf16.mxu0 %v635
  %854 = vmatmul.mubr.bf16.gmra.mrb[0].mxu0 %v634
  %v855 = vpop.f32.mrb[0].mxu0
  %v856 = vadd.f32 %v675, %v855
  %v857 = vpop.f32.mrb[0].mxu0
  %v858 = vpop.f32.mrb[0].mxu0
  %v859 = vadd.f32 %v675, %v858
  %v860 = vpop.f32.mrb[0].mxu0
  %861 = vmatprep.mubr.bf16.mxu0 %v637
  %862 = vmatmul.mubr.bf16.gmra.mrb[0].mxu0 %v636
  %v863 = vpop.f32.mrb[0].mxu0
  %v864 = vadd.f32 %v675, %v863
  %v865 = vpop.f32.mrb[0].mxu0
  %v866 = vpop.f32.mrb[0].mxu0
  %v867 = vadd.f32 %v675, %v866
  %v868 = vpop.f32.mrb[0].mxu0
  %869 = vdwg.mxu0
  %vm870 = vcmask 130048
  %871 = vst.msk [vmem:[%s7] sm:$0xff] %vm870, %v808
  %872 = vst.msk [vmem:[%s7 + $0x8] sm:$0xff] %vm870, %v811
  %873 = vst.msk [vmem:[%s7 + $0x10] sm:$0xff] %vm870, %v816
  %874 = vst.msk [vmem:[%s7 + $0x18] sm:$0xff] %vm870, %v819
  %875 = vst.msk [vmem:[%s7 + $0x20] sm:$0xff] %vm870, %v824
  %876 = vst.msk [vmem:[%s7 + $0x28] sm:$0xff] %vm870, %v827
  %877 = vst.msk [vmem:[%s7 + $0x30] sm:$0xff] %vm870, %v832
  %878 = vst.msk [vmem:[%s7 + $0x38] sm:$0xff] %vm870, %v835
  %879 = vst.msk [vmem:[%s7 + $0x40] sm:$0xff] %vm870, %v840
  %880 = vst.msk [vmem:[%s7 + $0x48] sm:$0xff] %vm870, %v843
  %881 = vst.msk [vmem:[%s7 + $0x50] sm:$0xff] %vm870, %v848
  %882 = vst.msk [vmem:[%s7 + $0x58] sm:$0xff] %vm870, %v851
  %883 = vst.msk [vmem:[%s7 + $0x60] sm:$0xff] %vm870, %v856
  %884 = vst.msk [vmem:[%s7 + $0x68] sm:$0xff] %vm870, %v859
  %885 = vst.msk [vmem:[%s7 + $0x70] sm:$0xff] %vm870, %v864
  %886 = vst.msk [vmem:[%s7 + $0x78] sm:$0xff] %vm870, %v867
  // Predicated region
  $region30: #{stage2_mlp.1} parent=0 // pred_check
    _
  $region31: #{stage2_mlp.1} parent=0 // pred_check_branch
    %888 = sbr.rel (0) target = $region33
  $region32: #{stage2_mlp.1} parent=0 // pred_region
    _
  $region33: #{stage2_mlp.1} parent=0 // pred_fallthru
    _
  // Predicated region
  $region34: #{stage2_mlp.1} parent=0 // pred_check
    _
  $region35: #{stage2_mlp.1} parent=0 // pred_check_branch
    %890 = sbr.rel (0) target = $region37
  $region36: #{stage2_mlp.1} parent=0 // pred_region
    _
  $region37: #{stage2_mlp.1} parent=0 // pred_fallthru
    _

</llo_original>
